<compile_context>
chip_gen: v5e
topology: v5e:2x2
jax: 0.10.0
libtpu: 0.0.40
codegen_flags: <defaults>
</compile_context>

<pallas_src>
import jax
import jax.numpy as jnp
from jax.experimental import pallas as pl
from jax.experimental.pallas import tpu as pltpu

_LANE = 128
_SUBLANE = 8
_DEFAULT_BLOCK_ROWS = 4096          # 4096 * 128 * 4 B = 2 MiB of input per step
_SMALL_BATCH_ELEMS = 1 << 16        # below this, plain XLA is faster


def _round_up(n, m):
    return (n + m - 1) // m * m


def _choose_block_rows(rows, requested):
    """Pick a sublane-dense row-tile size for the 1-D batch grid."""
    block = _DEFAULT_BLOCK_ROWS if requested is None else int(requested)
    block = _round_up(max(block, _SUBLANE), _SUBLANE)
    rows8 = _round_up(rows, _SUBLANE)
    if block >= rows8:
        if rows8 > _SUBLANE:
            # Enough work for >1 tile: split so dimension_semantics=("parallel",)
            # can shard the grid across both TensorCores on v7x.
            block = _round_up(pl.cdiv(rows8, 2), _SUBLANE)
        else:
            block = rows8
    return block


def _fused_affine_kernel(p_ref, x_ref, o_ref):
    # p_ref: (4, 128) f32 lane-periodic parameters (built once in the wrapper):
    #   row 0: diag  = [w00, w11, w00, w11, ...]
    #   row 1: c_hi  = [w01,   0, w01,   0, ...]  -> multiplies the lane i+1 value
    #   row 2: c_lo  = [  0, w10,   0, w10, ...]  -> multiplies the lane i-1 value
    #   row 3: bias  = [ b0,  b1,  b0,  b1, ...]
    # x_ref / o_ref: (block_rows, 128) f32; even lane = feature 0, odd = feature 1.
    x = x_ref[...]
    # Pair-neighbor values via lane rotation (XLU).  The wraparound lanes are
    # multiplied by zero coefficients, so they never contaminate real outputs.
    x_next = pltpu.roll(x, shift=_LANE - 1, axis=1)   # lane i <- x[i + 1]
    x_prev = pltpu.roll(x, shift=1, axis=1)           # lane i <- x[i - 1]
    o_ref[...] = (p_ref[0:1, :] * x
                  + p_ref[1:2, :] * x_next
                  + p_ref[2:3, :] * x_prev
                  + p_ref[3:4, :])


def linear_regression_forward(x, w1, b1, w2, b2, *, block_rows=None,
                              force_pallas=False):
    """Forward pass of the two-layer LinearRegression module.

    x: (B, 2) batch-major (PyTorch nn.Linear layout).
    w1, w2: (2, 2) PyTorch-style (out_features, in_features); b1, b2: (2,).
    """
    B, F = x.shape
    assert F == 2 and w1.shape == (2, 2) and w2.shape == (2, 2)
    f32 = jnp.float32

    # --- Fuse the two affine layers (exact) --------------------------------
    #   (x @ W1.T + b1) @ W2.T + b2 == x @ (W2 @ W1).T + (W2 @ b1 + b2)
    w_eff = (w2 @ w1).astype(f32)          # (2, 2)
    b_eff = (w2 @ b1 + b2).astype(f32)     # (2,)

    # --- Small-batch dispatch: pad/launch overhead dominates, use plain XLA -
    if not force_pallas and B * F < _SMALL_BATCH_ELEMS:
        return (x.astype(f32) @ w_eff.T + b_eff).astype(x.dtype)

    # --- Lane-periodic parameter vregs, built once --------------------------
    lane_even = (jnp.arange(_LANE) % 2) == 0
    diag = jnp.where(lane_even, w_eff[0, 0], w_eff[1, 1])
    c_hi = jnp.where(lane_even, w_eff[0, 1], 0.0)
    c_lo = jnp.where(lane_even, 0.0, w_eff[1, 0])
    bias = jnp.where(lane_even, b_eff[0], b_eff[1])
    params = jnp.stack([diag, c_hi, c_lo, bias]).astype(f32)   # (4, 128)

    # --- Lane-dense slab: free flatten of the row-major (B, 2) input --------
    n_elems = B * F
    rows = pl.cdiv(n_elems, _LANE)
    block = _choose_block_rows(rows, block_rows)
    rows_padded = _round_up(rows, block)
    grid = (rows_padded // block,)

    x_flat = x.reshape(-1).astype(f32)
    pad = rows_padded * _LANE - n_elems
    if pad:
        x_flat = jnp.pad(x_flat, (0, pad))     # padded lanes sliced off below
    x2d = x_flat.reshape(rows_padded, _LANE)

    # VMEM: double-buffered input + output blocks + params, with headroom.
    block_bytes = block * _LANE * 4
    vmem_limit = min(max(4 * block_bytes + (1 << 20), 4 << 20), 32 << 20)

    out2d = pl.pallas_call(
        _fused_affine_kernel,
        out_shape=jax.ShapeDtypeStruct((rows_padded, _LANE), f32),
        grid_spec=pltpu.PrefetchScalarGridSpec(
            num_scalar_prefetch=0,
            grid=grid,
            in_specs=[
                # Lane-periodic params: same block every step (fetched once).
                pl.BlockSpec((4, _LANE), lambda i: (0, 0)),
                # Dense (block_rows, 128) batch tile, ~2 MiB per step.
                pl.BlockSpec((block, _LANE), lambda i: (i, 0)),
            ],
            out_specs=pl.BlockSpec((block, _LANE), lambda i: (i, 0)),
        ),
        compiler_params=pltpu.CompilerParams(
            dimension_semantics=("parallel",),   # independent tiles -> megacore
            vmem_limit_bytes=vmem_limit,
        ),
        cost_estimate=pl.CostEstimate(
            flops=6 * rows_padded * _LANE,
            transcendentals=0,
            bytes_accessed=4 * (2 * rows_padded * _LANE + 4 * _LANE),
        ),
    )(params, x2d)

    out = out2d.reshape(-1)[:n_elems].reshape(B, F)
    return out.astype(x.dtype)


def _init_params(key):
    """Deterministic parameter init mirroring nn.Linear(2, 2) shapes."""
    k1, k2, k3, k4 = jax.random.split(key, 4)
    bound = 1.0 / jnp.sqrt(2.0)  # PyTorch default: U(-1/sqrt(fan_in), +)
    w1 = jax.random.uniform(k1, (2, 2), jnp.float32, -bound, bound)
    b1 = jax.random.uniform(k2, (2,), jnp.float32, -bound, bound)
    w2 = jax.random.uniform(k3, (2, 2), jnp.float32, -bound, bound)
    b2 = jax.random.uniform(k4, (2,), jnp.float32, -bound, bound)
    return w1, b1, w2, b2


if __name__ == "__main__":
    key = jax.random.PRNGKey(0)
    kx, kp = jax.random.split(key)
    w1, b1, w2, b2 = _init_params(kp)

    # B=300: exercises lane padding + a single-tile grid.
    # B=1000: exercises a multi-step ("parallel") grid with 2 tiles.
    for B in (300, 1000):
        x = jax.random.normal(jax.random.fold_in(kx, B), (B, 2), jnp.float32)
        out = linear_regression_forward(x, w1, b1, w2, b2, force_pallas=True)
        out = jax.block_until_ready(out)
        ref = (x @ w1.T + b1) @ w2.T + b2
        assert out.shape == (B, 2)
        assert jnp.allclose(out, ref, atol=1e-5, rtol=1e-5)

    # Small-batch XLA fallback path (no Pallas launch).
    x_small = jax.random.normal(kx, (16, 2), jnp.float32)
    out_small = jax.block_until_ready(
        linear_regression_forward(x_small, w1, b1, w2, b2))
    ref_small = (x_small @ w1.T + b1) @ w2.T + b2
    assert jnp.allclose(out_small, ref_small, atol=1e-5, rtol=1e-5)

    print("KERNEL_OK")
</pallas_src>

<mosaic_0001>
module attributes {stable_mosaic.version = 11 : i64} {
  func.func @_fused_affine_kernel(%arg0: i32, %arg1: memref<4x128xf32, #tpu.memory_space<vmem>>, %arg2: memref<8x128xf32, #tpu.memory_space<vmem>>, %arg3: memref<8x128xf32, #tpu.memory_space<vmem>>) attributes {dimension_semantics = [#tpu.dimension_semantics<parallel>], iteration_bounds = array<i64: 1>, scalar_prefetch = 0 : i64, scratch_operands = 0 : i64, tpu.core_type = #tpu.core_type<tc>, window_params = [{pipeline_mode = #tpu.pipeline_mode<synchronous>, transform_indices = @transform_0, window_bounds = array<i64: 4, 128>}, {transform_indices = @transform_1, window_bounds = array<i64: 8, 128>}, {transform_indices = @transform_2, window_bounds = array<i64: 8, 128>}]} {
    %c0 = arith.constant 0 : index
    %c0_0 = arith.constant 0 : index
    %0 = vector.load %arg2[%c0, %c0_0] : memref<8x128xf32, #tpu.memory_space<vmem>>, vector<8x128xf32>
    %c127_i32 = arith.constant 127 : i32
    %1 = tpu.dynamic_rotate %0 by %c127_i32 dim 1 : vector<8x128xf32>, i32 -> vector<8x128xf32>
    %c1_i32 = arith.constant 1 : i32
    %2 = tpu.dynamic_rotate %0 by %c1_i32 dim 1 : vector<8x128xf32>, i32 -> vector<8x128xf32>
    %c0_1 = arith.constant 0 : index
    %c0_2 = arith.constant 0 : index
    %3 = vector.load %arg1[%c0_1, %c0_2] : memref<4x128xf32, #tpu.memory_space<vmem>>, vector<1x128xf32>
    %4 = vector.broadcast %3 : vector<1x128xf32> to vector<8x128xf32>
    %5 = arith.mulf %4, %0 : vector<8x128xf32>
    %c1 = arith.constant 1 : index
    %c0_3 = arith.constant 0 : index
    %6 = vector.load %arg1[%c1, %c0_3] : memref<4x128xf32, #tpu.memory_space<vmem>>, vector<1x128xf32>
    %7 = vector.broadcast %6 : vector<1x128xf32> to vector<8x128xf32>
    %8 = arith.mulf %7, %1 : vector<8x128xf32>
    %9 = arith.addf %5, %8 : vector<8x128xf32>
    %c2 = arith.constant 2 : index
    %c0_4 = arith.constant 0 : index
    %10 = vector.load %arg1[%c2, %c0_4] : memref<4x128xf32, #tpu.memory_space<vmem>>, vector<1x128xf32>
    %11 = vector.broadcast %10 : vector<1x128xf32> to vector<8x128xf32>
    %12 = arith.mulf %11, %2 : vector<8x128xf32>
    %13 = arith.addf %9, %12 : vector<8x128xf32>
    %c3 = arith.constant 3 : index
    %c0_5 = arith.constant 0 : index
    %14 = vector.load %arg1[%c3, %c0_5] : memref<4x128xf32, #tpu.memory_space<vmem>>, vector<1x128xf32>
    %15 = vector.broadcast %14 : vector<1x128xf32> to vector<8x128xf32>
    %16 = arith.addf %13, %15 : vector<8x128xf32>
    %c0_6 = arith.constant 0 : index
    %c0_7 = arith.constant 0 : index
    %17 = vector.load %arg3[%c0_6, %c0_7] : memref<8x128xf32, #tpu.memory_space<vmem>>, vector<8x128xf32>
    tpu.vector_store %arg3[%c0_6, %c0_7], %16 {strides = array<i32>} : memref<8x128xf32, #tpu.memory_space<vmem>>, vector<8x128xf32>,
    return
  }
  func.func @transform_0(%arg0: i32) -> (i32, i32) {
    %c0_i32 = arith.constant 0 : i32
    %c0_i32_0 = arith.constant 0 : i32
    %c0_i32_1 = arith.constant 0 : i32
    return %c0_i32, %c0_i32_0 : i32, i32
  }
  func.func @transform_1(%arg0: i32) -> (i32, i32) {
    %c0_i32 = arith.constant 0 : i32
    %c0_i32_0 = arith.constant 0 : i32
    return %arg0, %c0_i32 : i32, i32
  }
  func.func @transform_2(%arg0: i32) -> (i32, i32) {
    %c0_i32 = arith.constant 0 : i32
    %c0_i32_0 = arith.constant 0 : i32
    return %arg0, %c0_i32 : i32, i32
  }
}

</mosaic_0001>

<llo_original>
// kernel: tpu_custom_call.1
$region0: #{tpu_custom_call.1}
  #allocation0 [shape = 'u32[]', space=smem, size = 0x4, offset = 0x4, fixed_abs, tag = 'smem constant byte address 0x4 - core index']
  #allocation1 [shape = 'u32[72,128]{1,0:T(1,128)}', space=vmem, size = 0x9000, scoped, tag = 'internal scratch']
  %s0 = inlined_call_operand.hbm [shape: f32[4,128], index: 0, kind: input, shape index: {}]
  %s1 = inlined_call_operand.hbm [shape: f32[8,128], index: 1, kind: input, shape index: {}]
  %s2 = inlined_call_operand.hbm [shape: f32[8,128], index: 2, kind: output, shape index: {}]
  %s3 = sld [smem:[#allocation0]]
  $region26: #{tpu_custom_call.1} parent=0
    _
  %s5 = ssub.s32 1, %s3
  %s6 = scalar_select 0, %s5, %s3
  $region1: #{tpu_custom_call.1} parent=0
    #allocation2 [shape = 'u8[2048]{0}', space=vmem, size = 0x800, scoped, tag = 'input window, operand 0, single buffered']
    #allocation3 [shape = 's32[1]{0}', space=sflag, size = 0x4, scoped, tag = 'scoped memory for tpu_custom_call.1']
    #allocation4 [shape = 's32[1]{0}', space=sflag, size = 0x4, scoped, tag = 'scoped memory for tpu_custom_call.1']
    #allocation5 [shape = 'u8[4096]{0}', space=vmem, size = 0x1000, scoped, tag = 'input window, operand 1, single buffered']
    #allocation6 [shape = 's32[1]{0}', space=sflag, size = 0x4, scoped, tag = 'scoped memory for tpu_custom_call.1']
    #allocation7 [shape = 'u8[4096]{0}', space=vmem, size = 0x1000, scoped, tag = 'output window, operand 0, single buffered']
    %7 = vsyncpa [#allocation3], 0
    %8 = vsyncpa [#allocation6], 0
    %9 = vsyncpa [#allocation4], 0
    // Predicated region
    $region2: #{tpu_custom_call.1} parent=1 // pred_check
      _
    $region3: #{tpu_custom_call.1} parent=1 // pred_check_branch
      %11 = sbr.rel (0) target = $region5
    $region4: #{tpu_custom_call.1} parent=1 // pred_region
      %13 = vsyncadd [#allocation3], 0
      %s15 = sshll.u32 %s0, 4
      %s16 = int_to_ptr.hbm [resolvable:$true] %s15
      %s17 = sshll.u32 [#allocation2], 4
      %s18 = int_to_ptr.vmem [resolvable:$true] %s17
      %20 = dma.hbm_to_vmem [thread:$0]  %s16, 64, %s18, [#allocation3]
    $region5: #{tpu_custom_call.1} parent=1 // pred_fallthru
      _
    // Predicated region
    $region6: #{tpu_custom_call.1} parent=1 // pred_check
      _
    $region7: #{tpu_custom_call.1} parent=1 // pred_check_branch
      %22 = sbr.rel (0) target = $region9
    $region8: #{tpu_custom_call.1} parent=1 // pred_region
      %24 = vsyncadd [#allocation6], 0
      %s26 = sshll.u32 %s1, 4
      %s27 = int_to_ptr.hbm [resolvable:$true] %s26
      %s28 = sshll.u32 [#allocation5], 4
      %s29 = int_to_ptr.vmem [resolvable:$true] %s28
      %31 = dma.hbm_to_vmem [thread:$0]  %s27, 128, %s29, [#allocation6]
    $region9: #{tpu_custom_call.1} parent=1 // pred_fallthru
      _
    // Predicated region
    $region10: #{tpu_custom_call.1} parent=1 // pred_check
      _
    $region11: #{tpu_custom_call.1} parent=1 // pred_check_branch
      %33 = sbr.rel (0) target = $region13
    $region12: #{tpu_custom_call.1} parent=1 // pred_region
      %35 = dma.done [#allocation3], 64
    $region13: #{tpu_custom_call.1} parent=1 // pred_fallthru
      _
    // Predicated region
    $region14: #{tpu_custom_call.1} parent=1 // pred_check
      _
    $region15: #{tpu_custom_call.1} parent=1 // pred_check_branch
      %37 = sbr.rel (0) target = $region17
    $region16: #{tpu_custom_call.1} parent=1 // pred_region
      %39 = dma.done [#allocation6], 128
    $region17: #{tpu_custom_call.1} parent=1 // pred_fallthru
      _
    %v40 = vld [vmem:[#allocation5] sm:$0xff]
    %41 = vrot.lane.b32.xlu0 %v40, 127
    %v42 = vpop.permute.xlu0 %41
    %43 = vrot.lane.b32.xlu0 %v40, 1
    %v44 = vpop.permute.xlu0 %43
    %v45 = vld [vmem:[#allocation2] sm:$0x1]
    %v46 = vperm.slane %v45, 0
    %v47 = vmul.f32 %v46, %v40
    %v48 = vld [vmem:[#allocation2 + $0x1] sm:$0x1]
    %v49 = vperm.slane %v48, 0
    %v50 = vmul.f32 %v49, %v42
    %v51 = vadd.f32 %v47, %v50
    %v52 = vld [vmem:[#allocation2 + $0x2] sm:$0x1]
    %v53 = vperm.slane %v52, 0
    %v54 = vmul.f32 %v53, %v44
    %v55 = vadd.f32 %v51, %v54
    %v56 = vld [vmem:[#allocation2 + $0x3] sm:$0x1]
    %v57 = vperm.slane %v56, 0
    %v58 = vadd.f32 %v55, %v57
    %59 = vst [vmem:[#allocation7] sm:$0xff] %v58
    // Predicated region
    $region18: #{tpu_custom_call.1} parent=1 // pred_check
      _
    $region19: #{tpu_custom_call.1} parent=1 // pred_check_branch
      %61 = sbr.rel (0) target = $region21
    $region20: #{tpu_custom_call.1} parent=1 // pred_region
      %63 = vsyncadd [#allocation4], 0
      %s65 = sshll.u32 [#allocation7], 4
      %s66 = int_to_ptr.vmem [resolvable:$true] %s65
      %s67 = sshll.u32 %s2, 4
      %s68 = int_to_ptr.hbm [resolvable:$true] %s67
      %70 = dma.vmem_to_hbm [thread:$0]  %s66, 128, %s68, [#allocation4]
    $region21: #{tpu_custom_call.1} parent=1 // pred_fallthru
      _
    // Predicated region
    $region22: #{tpu_custom_call.1} parent=1 // pred_check
      _
    $region23: #{tpu_custom_call.1} parent=1 // pred_check_branch
      %72 = sbr.rel (0) target = $region25
    $region24: #{tpu_custom_call.1} parent=1 // pred_region
      %74 = dma.done [#allocation4], 128
    $region25: #{tpu_custom_call.1} parent=1 // pred_fallthru
      _
    %75 = vsyncpa [#allocation3], 1
    %76 = vsyncpa [#allocation6], 1
    %77 = vsyncpa [#allocation4], 1

</llo_original>
